<compile_context>
chip_gen: v7x
topology: tpu7x:2x2x1
jax: 0.10.0
libtpu: 0.0.40
codegen_flags: <defaults>
</compile_context>

<pallas_src>
import jax
import jax.numpy as jnp
from jax.experimental import pallas as pl
from jax.experimental.pallas import tpu as pltpu

_LANE = 128                              # vreg lane width
_SUBLANE = 8                             # vreg sublane count (f32)
_TARGET_BLOCK_BYTES = 8 * 1024 * 1024    # ~8 MiB/block -> <=32 MiB w/ dbl-buffer
_TINY_BYTES = 2 * 1024 * 1024            # below this a single block is fine
_VMEM_LIMIT_BYTES = 48 * 1024 * 1024     # below v7x's 64 MiB physical VMEM


def _identity_kernel(x_ref, o_ref):
    # Forward pass of the (empty) Omni_transformer: pass the tile through.
    o_ref[...] = x_ref[...]


def _round_up(v: int, m: int) -> int:
    return ((v + m - 1) // m) * m


def _choose_slab(total: int):
    """Pick (rows, cols) for a lane-dense 2-D slab.

    cols is the widest multiple of 128 (<=4096) dividing `total`; wider lane
    dims give longer unmasked vst / DMA bursts. Prefer a factorization with
    rows >= 8 so the sublane dim is non-degenerate."""
    candidates = [c for c in (4096, 2048, 1024, 512, 256, 128) if total % c == 0]
    if not candidates:
        return None
    for c in candidates:
        if total // c >= _SUBLANE:
            return total // c, c
    c = candidates[0]
    return total // c, c


def _choose_tile_rows(rows: int, cols: int, itemsize: int) -> int:
    """Row tile sized to ~_TARGET_BLOCK_BYTES, a multiple of 8, and giving
    >=2 grid steps for non-tiny inputs (v7x has 2 TensorCores/chip)."""
    bytes_per_row = cols * itemsize
    if rows * bytes_per_row <= _TINY_BYTES or rows <= _SUBLANE:
        return rows                      # single full-slab block (tiny input)
    tile = max(_SUBLANE, (_TARGET_BLOCK_BYTES // bytes_per_row) // _SUBLANE * _SUBLANE)
    # Guarantee at least 2 grid steps so both TensorCores get work.
    half = max(_SUBLANE, (pl.cdiv(rows, 2) // _SUBLANE) * _SUBLANE)
    if half < rows:
        tile = min(tile, half)
    return tile


def _compiler_params():
    return pltpu.CompilerParams(
        dimension_semantics=("parallel",),
        vmem_limit_bytes=_VMEM_LIMIT_BYTES,
    )


def _cost(total_elems: int, itemsize: int):
    return pl.CostEstimate(
        flops=0,
        transcendentals=0,
        bytes_accessed=2 * total_elems * itemsize,
    )


def _lane_dense_call(x: jax.Array, io_alias) -> jax.Array:
    """Identity via a lane-dense (rows, wide-cols) slab with multi-MiB blocks."""
    orig_shape = x.shape
    total = x.size
    itemsize = jnp.dtype(x.dtype).itemsize
    rows, cols = _choose_slab(total)
    x2d = x.reshape(rows, cols)
    tile_rows = _choose_tile_rows(rows, cols, itemsize)
    grid = (pl.cdiv(rows, tile_rows),)   # ragged last block handled by Pallas
    spec = pl.BlockSpec((tile_rows, cols), lambda i: (i, 0))
    y2d = pl.pallas_call(
        _identity_kernel,
        out_shape=jax.ShapeDtypeStruct((rows, cols), x.dtype),
        grid=grid,
        in_specs=[spec],
        out_specs=spec,
        input_output_aliases=io_alias,
        cost_estimate=_cost(total, itemsize),
        compiler_params=_compiler_params(),
    )(x2d)
    return y2d.reshape(orig_shape)


def _direct_tile_call(x: jax.Array, io_alias) -> jax.Array:
    """Identity tiling the ORIGINAL shape along its leading dim (no reshape,
    so no hidden relayout copies when the last dim is not a multiple of 128)."""
    shape = x.shape
    ndim = x.ndim
    itemsize = jnp.dtype(x.dtype).itemsize
    total = x.size

    if ndim == 1:
        # Last dim not a multiple of 128 -> block must equal the full dim.
        spec = pl.BlockSpec(shape, lambda i: (0,))
        grid = (1,)
    else:
        d0 = shape[0]
        trailing = shape[1:]
        trailing_elems = 1
        for d in trailing:
            trailing_elems *= d
        bytes_per_slice = max(1, trailing_elems) * itemsize
        chunk0 = max(1, _TARGET_BLOCK_BYTES // bytes_per_slice)
        chunk0 = min(chunk0, d0)
        # Give both v7x TensorCores work when there is enough data to split.
        if chunk0 == d0 and d0 >= 2 and d0 * bytes_per_slice > _TINY_BYTES:
            chunk0 = pl.cdiv(d0, 2)
        if ndim == 2 and chunk0 != d0:
            # Second-to-last block dim must be a multiple of 8 (or the full dim).
            chunk0 = max(_SUBLANE, (chunk0 // _SUBLANE) * _SUBLANE)
            if chunk0 >= d0:
                chunk0 = d0
        grid = (pl.cdiv(d0, chunk0),)
        block = (chunk0,) + trailing
        spec = pl.BlockSpec(block, lambda i, _n=ndim: (i,) + (0,) * (_n - 1))

    return pl.pallas_call(
        _identity_kernel,
        out_shape=jax.ShapeDtypeStruct(shape, x.dtype),
        grid=grid,
        in_specs=[spec],
        out_specs=spec,
        input_output_aliases=io_alias,
        cost_estimate=_cost(total, itemsize),
        compiler_params=_compiler_params(),
    )(x)


def omni_transformer_forward(
    x: jax.Array,
    *,
    use_pallas_kernel: bool = False,
    donate_input: bool = False,
) -> jax.Array:
    """Pallas-backed forward for Omni_transformer.

    The reference forward() is a no-op, so by default we return `x` without
    touching HBM at all (the fastest possible "kernel"). Set
    `use_pallas_kernel=True` to run the tuned identity-copy Pallas kernel
    (benchmark / exercise mode). `donate_input=True` aliases the input buffer
    into the output (halves bytes moved); only use it when the caller does not
    reuse `x` afterwards.
    """
    if not use_pallas_kernel:
        return x  # semantically faithful: the module's forward does nothing

    if x.ndim == 0 or x.size == 0:
        return x  # nothing to tile

    io_alias = {0: 0} if donate_input else {}

    # Lane-dense reshape path only when it is layout-preserving
    # (original last dim already a multiple of 128).
    if x.shape[-1] % _LANE == 0:
        return _lane_dense_call(x, io_alias)
    return _direct_tile_call(x, io_alias)


if __name__ == "__main__":
    key = jax.random.PRNGKey(0)
    # Small, module-consistent shapes: batch=2, seq=8, hidden=128.
    x = jax.random.normal(key, (2, 8, 128), dtype=jnp.float32)

    # Default semantic path: the reference forward is a no-op.
    y_fast = omni_transformer_forward(x)
    assert y_fast is x

    # Pallas kernel path (lane-dense slab).
    y = omni_transformer_forward(x, use_pallas_kernel=True)
    jax.block_until_ready(y)
    assert y.shape == x.shape and y.dtype == x.dtype
    assert bool(jnp.all(y == x))

    # Pallas kernel path for a non-128-aligned hidden size (direct tiling).
    x2 = jax.random.normal(jax.random.PRNGKey(0), (2, 8, 32), dtype=jnp.float32)
    y2 = omni_transformer_forward(x2, use_pallas_kernel=True)
    jax.block_until_ready(y2)
    assert y2.shape == x2.shape and y2.dtype == x2.dtype
    assert bool(jnp.all(y2 == x2))

    print("KERNEL_OK")
</pallas_src>

<mosaic_0001>
module attributes {stable_mosaic.version = 11 : i64} {
  func.func @_identity_kernel(%arg0: i32, %arg1: memref<8x256xf32, #tpu.memory_space<vmem>>, %arg2: memref<8x256xf32, #tpu.memory_space<vmem>>) attributes {dimension_semantics = [#tpu.dimension_semantics<parallel>], iteration_bounds = array<i64: 1>, scalar_prefetch = 0 : i64, scratch_operands = 0 : i64, tpu.core_type = #tpu.core_type<tc>, window_params = [{transform_indices = @transform_0, window_bounds = array<i64: 8, 256>}, {transform_indices = @transform_1, window_bounds = array<i64: 8, 256>}]} {
    %c0 = arith.constant 0 : index
    %c0_0 = arith.constant 0 : index
    %0 = vector.load %arg1[%c0, %c0_0] : memref<8x256xf32, #tpu.memory_space<vmem>>, vector<8x256xf32>
    %c0_1 = arith.constant 0 : index
    %c0_2 = arith.constant 0 : index
    %1 = vector.load %arg2[%c0_1, %c0_2] : memref<8x256xf32, #tpu.memory_space<vmem>>, vector<8x256xf32>
    tpu.vector_store %arg2[%c0_1, %c0_2], %0 {strides = array<i32>} : memref<8x256xf32, #tpu.memory_space<vmem>>, vector<8x256xf32>,
    return
  }
  func.func @transform_0(%arg0: i32) -> (i32, i32) {
    %c0_i32 = arith.constant 0 : i32
    %c0_i32_0 = arith.constant 0 : i32
    return %arg0, %c0_i32 : i32, i32
  }
  func.func @transform_1(%arg0: i32) -> (i32, i32) {
    %c0_i32 = arith.constant 0 : i32
    %c0_i32_0 = arith.constant 0 : i32
    return %arg0, %c0_i32 : i32, i32
  }
}

</mosaic_0001>

<llo_original>
// kernel: tpu_custom_call.1
$region0: #{tpu_custom_call.1}
  #allocation0 [shape = 'u32[]', space=smem, size = 0x4, offset = 0x4, fixed_abs, tag = 'smem constant byte address 0x4 - core index']
  #allocation1 [shape = 'u32[144,128]{1,0:T(1,128)}', space=vmem, size = 0x12000, scoped, tag = 'internal scratch']
  %s0 = inlined_call_operand.hbm [shape: f32[8,256], index: 0, kind: input, shape index: {}]
  %s1 = inlined_call_operand.hbm [shape: f32[8,256], index: 1, kind: output, shape index: {}]
  %s2 = sld [smem:[#allocation0]]
  $region18: #{tpu_custom_call.1} parent=0
    _
  %s4 = ssub.s32 1, %s2
  %s5 = scalar_select 0, %s4, %s2
  $region1: #{tpu_custom_call.1} parent=0
    #allocation2 [shape = 'u8[8192]{0}', space=vmem, size = 0x2000, scoped, tag = 'input window, operand 0, single buffered']
    #allocation3 [shape = 's32[1]{0}', space=sflag, size = 0x4, scoped, tag = 'scoped memory for tpu_custom_call.1']
    #allocation4 [shape = 's32[1]{0}', space=sflag, size = 0x4, scoped, tag = 'scoped memory for tpu_custom_call.1']
    #allocation5 [shape = 'u8[8192]{0}', space=vmem, size = 0x2000, scoped, tag = 'output window, operand 0, single buffered']
    %6 = vsyncpa [#allocation3], 0
    %7 = vsyncpa [#allocation4], 0
    // Predicated region
    $region2: #{tpu_custom_call.1} parent=1 // pred_check
      _
    $region3: #{tpu_custom_call.1} parent=1 // pred_check_branch
      %9 = sbr.rel (0) target = $region5
    $region4: #{tpu_custom_call.1} parent=1 // pred_region
      %s11 = ssub.s32 256, 256
      %12 = vsyncadd [#allocation3], %s11
      %s14 = sshll.u32 [#allocation2], 4
      %s15 = int_to_ptr.vmem [resolvable:$true] %s14
      %17 = dma.hbm_to_vmem [thread:$0]  %s0, 256, %s15, [#allocation3]
    $region5: #{tpu_custom_call.1} parent=1 // pred_fallthru
      _
    // Predicated region
    $region6: #{tpu_custom_call.1} parent=1 // pred_check
      _
    $region7: #{tpu_custom_call.1} parent=1 // pred_check_branch
      %19 = sbr.rel (0) target = $region9
    $region8: #{tpu_custom_call.1} parent=1 // pred_region
      %20 = dma.done [#allocation3], 256
    $region9: #{tpu_custom_call.1} parent=1 // pred_fallthru
      _
    %v21 = vld [vmem:[#allocation2] sm:$0xff]
    %v22 = vld [vmem:[#allocation2 + $0x8] sm:$0xff]
    %23 = vst [vmem:[#allocation5] sm:$0xff] %v21
    %24 = vst [vmem:[#allocation5 + $0x8] sm:$0xff] %v22
    // Predicated region
    $region10: #{tpu_custom_call.1} parent=1 // pred_check
      _
    $region11: #{tpu_custom_call.1} parent=1 // pred_check_branch
      %26 = sbr.rel (0) target = $region13
    $region12: #{tpu_custom_call.1} parent=1 // pred_region
      %s28 = ssub.s32 256, 256
      %29 = vsyncadd [#allocation4], %s28
      %s31 = sshll.u32 [#allocation5], 4
      %s32 = int_to_ptr.vmem [resolvable:$true] %s31
      %34 = dma.vmem_to_hbm [thread:$0]  %s32, 256, %s1, [#allocation4]
    $region13: #{tpu_custom_call.1} parent=1 // pred_fallthru
      _
    // Predicated region
    $region14: #{tpu_custom_call.1} parent=1 // pred_check
      _
    $region15: #{tpu_custom_call.1} parent=1 // pred_check_branch
      %36 = sbr.rel (0) target = $region17
    $region16: #{tpu_custom_call.1} parent=1 // pred_region
      %37 = dma.done [#allocation4], 256
    $region17: #{tpu_custom_call.1} parent=1 // pred_fallthru
      _
    %38 = vsyncpa [#allocation3], 1
    %39 = vsyncpa [#allocation4], 1

</llo_original>
